<compile_context>
chip_gen: v7x
topology: tpu7x:2x2x1
jax: 0.10.0
libtpu: 0.0.40
codegen_flags: <defaults>
</compile_context>

<pallas_src>
import functools

import numpy as np

import jax
import jax.numpy as jnp
from jax import lax
from jax.experimental import pallas as pl
from jax.experimental.pallas import tpu as pltpu


def _round_up(x, m):
    return (x + m - 1) // m * m


def _anchor_dp_kernel(idx_ref, data_ref, pat_ref, bias_ref,
                      chan_ref, stats_ref, *, gamma, norm_ratio, tout):
    # Static shapes.
    C = data_ref.shape[1]            # data_ref: (1, C, T_pad), zero padded past T
    T_pad = data_ref.shape[2]
    K = pat_ref.shape[2]             # pat_ref:  (1, C, K)  (anchor-selected block)
    Tout_pad = chan_ref.shape[2]     # lane-aligned channel width (>= tout)

    # ---- fused preprocessing: pattern L2 column-normalize -------------------
    # pattern = norm_ratio * F.normalize(patterns[anchor], p=2, dim=0)
    p = pat_ref[0]                                   # (C, K), tiny
    sumsq = jnp.sum(p * p, axis=0, keepdims=True)    # (1, K)
    inv_norm = lax.rsqrt(jnp.maximum(sumsq, 1e-24))  # == 1 / max(||p||2, 1e-12)
    pn = (norm_ratio * inv_norm) * p                 # (C, K)

    d = data_ref[0]                                  # (C, T_pad), zeros past T

    # ---- ungapped sliding-window matching (ASM with gap_array == 0) ---------
    # acc[c, t] = sum_k pn[c, k] * d[c, t + k]; shifted windows are lane
    # rotations (XLU). Tree-accumulate with 4 partials (no f32 FMA on the VPU,
    # so a single accumulator would serialize K dependent adds).
    n_part = min(4, K)
    parts = []
    for r in range(n_part):
        acc = None
        for k in range(r, K, n_part):
            win = d if k == 0 else pltpu.roll(d, shift=T_pad - k, axis=1)
            term = win * pn[:, k:k + 1]
            acc = term if acc is None else acc + term
        parts.append(acc)
    while len(parts) > 1:                            # pairwise combine
        nxt = []
        for i in range(0, len(parts), 2):
            nxt.append(parts[i] + parts[i + 1] if i + 1 < len(parts) else parts[i])
        parts = nxt
    asm = jnp.sum(parts[0], axis=0, keepdims=True)   # (1, T_pad) one sublane reduce

    # ---- channel = LeakyReLU(ASM + bias[anchor], 0.001) on valid lanes ------
    b = bias_ref[idx_ref[pl.program_id(0)]]          # scalar from SMEM
    lane = lax.broadcasted_iota(jnp.int32, (1, T_pad), 1)
    valid = lane < tout
    pre = asm + b
    channel = jnp.where(valid, jnp.where(pre >= 0, pre, 0.001 * pre), 0.0)
    chan_ref[0] = channel[:, :Tout_pad]              # lane-dense store

    # ---- L1 normalize + softmax, reassociated ------------------------------
    # channel_norm = channel / max(||channel||_1, eps); z = channel_norm/gamma.
    # Since 1/(l1*gamma) > 0, max(z) = max(channel)/(l1*gamma), so the L1 sum
    # and the max are INDEPENDENT reductions and exp sees (channel-cmax)*scale.
    l1 = jnp.sum(jnp.abs(channel), axis=1, keepdims=True)                 # (1,1)
    cmax = jnp.max(jnp.where(valid, channel, -jnp.inf), axis=1, keepdims=True)
    scale = (1.0 / gamma) / jnp.maximum(l1, 1e-12)                        # (1,1)
    e = jnp.where(valid, jnp.exp((channel - cmax) * scale), 0.0)          # (1,T_pad)

    # ---- fused lane-reduce #1: rows {e, e*x} --------------------------------
    x = lane.astype(jnp.float32)
    row2 = lax.broadcasted_iota(jnp.int32, (2, T_pad), 0)
    fac1 = jnp.where(row2 == 0, jnp.float32(1.0), x)                      # (2,T_pad)
    red1 = jnp.sum(e * fac1, axis=1, keepdims=True)                       # (2,1)
    inv_se = 1.0 / red1[0:1, :]                      # exact; sum(e) >= 1
    mean = red1[1:2, :] * inv_se                     # sum(e*x)/sum(e)     (1,1)

    # ---- fused lane-reduce #2: rows {e*xd^2, xd^3, xd^4} --------------------
    x_diff = jnp.where(valid, x - mean, 0.0)
    xd2 = x_diff * x_diff
    row3 = lax.broadcasted_iota(jnp.int32, (3, T_pad), 0)
    sel = jnp.where(row3 == 0, e, jnp.where(row3 == 1, x_diff, xd2))      # (3,T_pad)
    red2 = jnp.sum(xd2 * sel, axis=1, keepdims=True)                      # (3,1)

    var = red2[0:1, :] * inv_se                      # distribution-weighted var
    m3 = red2[1:2, :] * (1.0 / tout)                 # uniform mean over tout
    m4 = red2[2:3, :] * (1.0 / tout)
    inv_std = lax.rsqrt(var)                         # no eps guard: matches reference
    inv_var = inv_std * inv_std
    skew = m3 * inv_std * inv_var                    # m3 / std**3
    kurt = m4 * inv_var * inv_var - 3.0              # m4 / var**2 - 3

    # lane-dense (1, 128) stats row: lane 0 = skewness, lane 1 = kurtosis.
    lane_s = lax.broadcasted_iota(jnp.int32, (1, stats_ref.shape[2]), 1)
    stats_ref[0] = jnp.where(lane_s == 0, skew, jnp.where(lane_s == 1, kurt, 0.0))


def anchor_dp_forward_batched(data, patterns, bias, anchor_indices,
                              gamma=1.0, norm_ratio=1.0):
    """Fused Anchor_dp forward over a batch of anchor indices.

    data: (1, C, T) float32 NCW; patterns: (anchor_n, C, K); bias: (anchor_n,).
    anchor_indices: (A,) int32. Returns (skews[A], kurts[A], channel[A,1,Tout]).
    """
    data = jnp.asarray(data, jnp.float32)
    patterns = jnp.asarray(patterns, jnp.float32)
    bias = jnp.asarray(bias, jnp.float32)
    aidx = jnp.asarray(anchor_indices, jnp.int32).reshape(-1)

    _, C, T = data.shape
    _, _, K = patterns.shape
    A = aidx.shape[0]
    Tout = T - K + 1
    T_pad = _round_up(T, 128)
    Tout_pad = _round_up(Tout, 128)
    stats_w = 128

    # Lane-aligned, zero-padded input slab (one cheap XLA pad); no in-kernel
    # staging scratch needed.
    if T_pad != T:
        data = jnp.pad(data, ((0, 0), (0, 0), (0, T_pad - T)))

    kernel = functools.partial(_anchor_dp_kernel, gamma=float(gamma),
                               norm_ratio=float(norm_ratio), tout=Tout)

    grid_spec = pltpu.PrefetchScalarGridSpec(
        num_scalar_prefetch=1,
        grid=(A,),
        in_specs=[
            # full padded data row; block index constant -> stays resident
            pl.BlockSpec((1, C, T_pad), lambda i, a: (0, 0, 0)),
            # patterns[anchor_indices[i]] selected via the scalar-prefetched ids
            pl.BlockSpec((1, C, K), lambda i, a: (a[i], 0, 0)),
            # full bias vector in SMEM; indexed with the anchor id in-kernel
            pl.BlockSpec(memory_space=pltpu.MemorySpace.SMEM),
        ],
        out_specs=(
            pl.BlockSpec((1, 1, Tout_pad), lambda i, a: (i, 0, 0)),   # channel
            pl.BlockSpec((1, 1, stats_w), lambda i, a: (i, 0, 0)),    # packed stats
        ),
    )

    chan, stats = pl.pallas_call(
        kernel,
        grid_spec=grid_spec,
        out_shape=(
            jax.ShapeDtypeStruct((A, 1, Tout_pad), jnp.float32),
            jax.ShapeDtypeStruct((A, 1, stats_w), jnp.float32),
        ),
        compiler_params=pltpu.CompilerParams(
            dimension_semantics=("parallel",)),      # anchors split across TCs (v7x)
    )(aidx, data, patterns, bias)

    channel = chan[:, :, :Tout]                      # (A, 1, Tout)
    skews = stats[:, 0, 0]
    kurts = stats[:, 0, 1]
    return skews, kurts, channel


def anchor_dp_forward(data, patterns, bias, anchor_index, gamma=1.0,
                      norm_ratio=1.0):
    """Single-anchor forward matching the PyTorch module signature.

    Returns (skewness, kurtosis, channel) with channel shape (1, T - K + 1).
    """
    aidx = jnp.asarray(anchor_index, jnp.int32).reshape(1)
    skews, kurts, channel = anchor_dp_forward_batched(
        data, patterns, bias, aidx, gamma=gamma, norm_ratio=norm_ratio)
    return skews[0], kurts[0], channel[0]


def _reference_forward(data, patterns, bias, anchor_index, gamma=1.0,
                       norm_ratio=1.0):
    """Pure-JAX reference of the same (ungapped) forward pass."""
    x = jnp.asarray(data, jnp.float32)[0]                    # (C, T)
    p = jnp.asarray(patterns, jnp.float32)[anchor_index]     # (C, K)
    col = jnp.sqrt(jnp.sum(p * p, axis=0, keepdims=True))
    pn = norm_ratio * p / jnp.maximum(col, 1e-12)
    C, T = x.shape
    K = pn.shape[1]
    Tout = T - K + 1
    asm = jnp.zeros((Tout,), jnp.float32)
    for k in range(K):
        asm = asm + jnp.sum(x[:, k:k + Tout] * pn[:, k:k + 1], axis=0)
    pre = asm + jnp.asarray(bias, jnp.float32)[anchor_index]
    channel = jnp.where(pre >= 0, pre, 0.001 * pre)[None, :]
    cn = channel / jnp.maximum(jnp.sum(jnp.abs(channel)), 1e-12)
    dist = jax.nn.softmax(cn / gamma, axis=1)
    xs = jnp.arange(Tout, dtype=jnp.float32)
    mean = jnp.sum(dist * xs)
    xd = xs - mean
    var = jnp.sum(dist * xd * xd)
    zs = xd / jnp.sqrt(var)
    skew = jnp.mean(zs ** 3)
    kurt = jnp.mean(zs ** 4) - 3.0
    return skew, kurt, channel


if __name__ == "__main__":
    key = jax.random.PRNGKey(0)
    k_pat, k_data = jax.random.split(key)

    kernel_size = 8
    anchor_n = 4
    in_dim = 4          # fixed by the module (self.in_dim = 4)
    T = 135             # -> channel length 128 (lane friendly)
    anchor_index = 1

    # Deterministic parameter init mirroring __init__:
    #   patterns ~ U[0,1) of shape [anchor_n, in_dim, kernel_size]
    #   bias = -0.4 * kernel_size * ones([anchor_n])
    patterns = jax.random.uniform(k_pat, (anchor_n, in_dim, kernel_size),
                                  dtype=jnp.float32)
    bias = -0.4 * kernel_size * jnp.ones((anchor_n,), jnp.float32)
    data = jax.random.uniform(k_data, (1, in_dim, T), dtype=jnp.float32)

    # --- single-anchor path (matches the PyTorch forward signature) ----------
    fwd = jax.jit(anchor_dp_forward, static_argnames=("gamma", "norm_ratio"))
    skew, kurt, channel = fwd(data, patterns, bias, anchor_index,
                              gamma=1.0, norm_ratio=1.0)
    jax.block_until_ready((skew, kurt, channel))

    r_skew, r_kurt, r_channel = _reference_forward(
        data, patterns, bias, anchor_index, gamma=1.0, norm_ratio=1.0)
    np.testing.assert_allclose(np.asarray(channel), np.asarray(r_channel),
                               rtol=1e-3, atol=1e-4)
    np.testing.assert_allclose(float(skew), float(r_skew), rtol=1e-3, atol=1e-3)
    np.testing.assert_allclose(float(kurt), float(r_kurt), rtol=1e-3, atol=1e-3)

    # --- batched path: all anchors in one launch (parallel grid) -------------
    fwd_b = jax.jit(anchor_dp_forward_batched,
                    static_argnames=("gamma", "norm_ratio"))
    all_idx = jnp.arange(anchor_n, dtype=jnp.int32)
    skews, kurts, channels = fwd_b(data, patterns, bias, all_idx,
                                   gamma=1.0, norm_ratio=1.0)
    jax.block_until_ready((skews, kurts, channels))
    for a in range(anchor_n):
        rs, rk, rc = _reference_forward(data, patterns, bias, a,
                                        gamma=1.0, norm_ratio=1.0)
        np.testing.assert_allclose(np.asarray(channels[a]), np.asarray(rc),
                                   rtol=1e-3, atol=1e-4)
        np.testing.assert_allclose(float(skews[a]), float(rs),
                                   rtol=1e-3, atol=1e-3)
        np.testing.assert_allclose(float(kurts[a]), float(rk),
                                   rtol=1e-3, atol=1e-3)

    print("KERNEL_OK")
</pallas_src>

<mosaic_0001>
module attributes {stable_mosaic.version = 11 : i64} {
  func.func @_anchor_dp_kernel(%arg0: i32, %arg1: memref<1xi32, #tpu.memory_space<smem>>, %arg2: memref<1x4x256xf32, #tpu.memory_space<vmem>>, %arg3: memref<1x4x8xf32, #tpu.memory_space<vmem>>, %arg4: memref<4xf32, #tpu.memory_space<smem>>, %arg5: memref<1x1x128xf32, #tpu.memory_space<vmem>>, %arg6: memref<1x1x128xf32, #tpu.memory_space<vmem>>) attributes {dimension_semantics = [#tpu.dimension_semantics<parallel>], iteration_bounds = array<i64: 1>, scalar_prefetch = 1 : i64, scratch_operands = 0 : i64, tpu.core_type = #tpu.core_type<tc>, window_params = [{pipeline_mode = #tpu.pipeline_mode<synchronous>, transform_indices = @transform_0, window_bounds = array<i64: 1, 4, 256>}, {transform_indices = @transform_1, window_bounds = array<i64: 1, 4, 8>}, {transform_indices = @transform_2, window_bounds = array<i64: 4>}, {transform_indices = @transform_3, window_bounds = array<i64: 1, 1, 128>}, {transform_indices = @transform_4, window_bounds = array<i64: 1, 1, 128>}]} {
    %c0 = arith.constant 0 : index
    %c0_0 = arith.constant 0 : index
    %c0_1 = arith.constant 0 : index
    %0 = vector.load %arg3[%c0, %c0_0, %c0_1] : memref<1x4x8xf32, #tpu.memory_space<vmem>>, vector<1x4x8xf32>
    %1 = vector.shape_cast %0 : vector<1x4x8xf32> to vector<4x8xf32>
    %2 = arith.mulf %1, %1 : vector<4x8xf32>
    %cst = arith.constant dense<0.000000e+00> : vector<8xf32>
    %3 = vector.multi_reduction <add>, %2, %cst [0] : vector<4x8xf32> to vector<8xf32>
    %4 = vector.shape_cast %3 : vector<8xf32> to vector<1x8xf32>
    %cst_2 = arith.constant 1.000000e-24 : f32
    %5 = vector.broadcast %cst_2 : f32 to vector<1x8xf32>
    %6 = arith.maximumf %4, %5 : vector<1x8xf32>
    %7 = math.rsqrt %6 : vector<1x8xf32>
    %cst_3 = arith.constant 1.000000e+00 : f32
    %8 = vector.broadcast %cst_3 : f32 to vector<1x8xf32>
    %9 = arith.mulf %8, %7 : vector<1x8xf32>
    %10 = vector.broadcast %9 : vector<1x8xf32> to vector<4x8xf32>
    %11 = arith.mulf %10, %1 : vector<4x8xf32>
    %c0_4 = arith.constant 0 : index
    %c0_5 = arith.constant 0 : index
    %c0_6 = arith.constant 0 : index
    %12 = vector.load %arg2[%c0_4, %c0_5, %c0_6] : memref<1x4x256xf32, #tpu.memory_space<vmem>>, vector<1x4x256xf32>
    %13 = vector.shape_cast %12 : vector<1x4x256xf32> to vector<4x256xf32>
    %14 = vector.extract_strided_slice %11 {offsets = [0, 0], sizes = [4, 1], strides = [1, 1]} : vector<4x8xf32> to vector<4x1xf32>
    %15 = vector.broadcast %14 : vector<4x1xf32> to vector<4x256xf32>
    %16 = arith.mulf %13, %15 : vector<4x256xf32>
    %c252_i32 = arith.constant 252 : i32
    %17 = tpu.dynamic_rotate %13 by %c252_i32 dim 1 : vector<4x256xf32>, i32 -> vector<4x256xf32>
    %18 = vector.extract_strided_slice %11 {offsets = [0, 4], sizes = [4, 1], strides = [1, 1]} : vector<4x8xf32> to vector<4x1xf32>
    %19 = vector.broadcast %18 : vector<4x1xf32> to vector<4x256xf32>
    %20 = arith.mulf %17, %19 : vector<4x256xf32>
    %21 = arith.addf %16, %20 : vector<4x256xf32>
    %c255_i32 = arith.constant 255 : i32
    %22 = tpu.dynamic_rotate %13 by %c255_i32 dim 1 : vector<4x256xf32>, i32 -> vector<4x256xf32>
    %23 = vector.extract_strided_slice %11 {offsets = [0, 1], sizes = [4, 1], strides = [1, 1]} : vector<4x8xf32> to vector<4x1xf32>
    %24 = vector.broadcast %23 : vector<4x1xf32> to vector<4x256xf32>
    %25 = arith.mulf %22, %24 : vector<4x256xf32>
    %c251_i32 = arith.constant 251 : i32
    %26 = tpu.dynamic_rotate %13 by %c251_i32 dim 1 : vector<4x256xf32>, i32 -> vector<4x256xf32>
    %27 = vector.extract_strided_slice %11 {offsets = [0, 5], sizes = [4, 1], strides = [1, 1]} : vector<4x8xf32> to vector<4x1xf32>
    %28 = vector.broadcast %27 : vector<4x1xf32> to vector<4x256xf32>
    %29 = arith.mulf %26, %28 : vector<4x256xf32>
    %30 = arith.addf %25, %29 : vector<4x256xf32>
    %c254_i32 = arith.constant 254 : i32
    %31 = tpu.dynamic_rotate %13 by %c254_i32 dim 1 : vector<4x256xf32>, i32 -> vector<4x256xf32>
    %32 = vector.extract_strided_slice %11 {offsets = [0, 2], sizes = [4, 1], strides = [1, 1]} : vector<4x8xf32> to vector<4x1xf32>
    %33 = vector.broadcast %32 : vector<4x1xf32> to vector<4x256xf32>
    %34 = arith.mulf %31, %33 : vector<4x256xf32>
    %c250_i32 = arith.constant 250 : i32
    %35 = tpu.dynamic_rotate %13 by %c250_i32 dim 1 : vector<4x256xf32>, i32 -> vector<4x256xf32>
    %36 = vector.extract_strided_slice %11 {offsets = [0, 6], sizes = [4, 1], strides = [1, 1]} : vector<4x8xf32> to vector<4x1xf32>
    %37 = vector.broadcast %36 : vector<4x1xf32> to vector<4x256xf32>
    %38 = arith.mulf %35, %37 : vector<4x256xf32>
    %39 = arith.addf %34, %38 : vector<4x256xf32>
    %c253_i32 = arith.constant 253 : i32
    %40 = tpu.dynamic_rotate %13 by %c253_i32 dim 1 : vector<4x256xf32>, i32 -> vector<4x256xf32>
    %41 = vector.extract_strided_slice %11 {offsets = [0, 3], sizes = [4, 1], strides = [1, 1]} : vector<4x8xf32> to vector<4x1xf32>
    %42 = vector.broadcast %41 : vector<4x1xf32> to vector<4x256xf32>
    %43 = arith.mulf %40, %42 : vector<4x256xf32>
    %c249_i32 = arith.constant 249 : i32
    %44 = tpu.dynamic_rotate %13 by %c249_i32 dim 1 : vector<4x256xf32>, i32 -> vector<4x256xf32>
    %45 = vector.extract_strided_slice %11 {offsets = [0, 7], sizes = [4, 1], strides = [1, 1]} : vector<4x8xf32> to vector<4x1xf32>
    %46 = vector.broadcast %45 : vector<4x1xf32> to vector<4x256xf32>
    %47 = arith.mulf %44, %46 : vector<4x256xf32>
    %48 = arith.addf %43, %47 : vector<4x256xf32>
    %49 = arith.addf %21, %30 : vector<4x256xf32>
    %50 = arith.addf %39, %48 : vector<4x256xf32>
    %51 = arith.addf %49, %50 : vector<4x256xf32>
    %cst_7 = arith.constant dense<0.000000e+00> : vector<256xf32>
    %52 = vector.multi_reduction <add>, %51, %cst_7 [0] : vector<4x256xf32> to vector<256xf32>
    %53 = vector.shape_cast %52 : vector<256xf32> to vector<1x256xf32>
    %54 = arith.index_cast %arg0 : i32 to index
    %55 = memref.load %arg1[%54] : memref<1xi32, #tpu.memory_space<smem>>
    %56 = arith.index_cast %55 : i32 to index
    %57 = memref.load %arg4[%56] : memref<4xf32, #tpu.memory_space<smem>>
    %58 = tpu.iota {dimensions = array<i32: 1>} : vector<1x256xi32>
    %c128_i32 = arith.constant 128 : i32
    %59 = vector.broadcast %c128_i32 : i32 to vector<1x256xi32>
    %60 = arith.cmpi slt, %58, %59 : vector<1x256xi32>
    %61 = vector.broadcast %57 : f32 to vector<1x256xf32>
    %62 = arith.addf %53, %61 : vector<1x256xf32>
    %cst_8 = arith.constant 0.000000e+00 : f32
    %63 = vector.broadcast %cst_8 : f32 to vector<1x256xf32>
    %64 = arith.cmpf oge, %62, %63 : vector<1x256xf32>
    %cst_9 = arith.constant 1.000000e-03 : f32
    %65 = vector.broadcast %cst_9 : f32 to vector<1x256xf32>
    %66 = arith.mulf %65, %62 : vector<1x256xf32>
    %67 = arith.select %64, %62, %66 : vector<1x256xi1>, vector<1x256xf32>
    %cst_10 = arith.constant 0.000000e+00 : f32
    %68 = vector.broadcast %cst_10 : f32 to vector<1x256xf32>
    %69 = arith.select %60, %67, %68 : vector<1x256xi1>, vector<1x256xf32>
    %70 = vector.extract_strided_slice %69 {offsets = [0, 0], sizes = [1, 128], strides = [1, 1]} : vector<1x256xf32> to vector<1x128xf32>
    %c0_11 = arith.constant 0 : index
    %c0_12 = arith.constant 0 : index
    %c0_13 = arith.constant 0 : index
    %71 = vector.load %arg5[%c0_11, %c0_12, %c0_13] : memref<1x1x128xf32, #tpu.memory_space<vmem>>, vector<1x1x128xf32>
    %72 = vector.shape_cast %71 : vector<1x1x128xf32> to vector<1x128xf32>
    %73 = vector.shape_cast %70 : vector<1x128xf32> to vector<1x1x128xf32>
    tpu.vector_store %arg5[%c0_11, %c0_12, %c0_13], %73 {strides = array<i32>} : memref<1x1x128xf32, #tpu.memory_space<vmem>>, vector<1x1x128xf32>,
    %74 = math.absf %69 : vector<1x256xf32>
    %cst_14 = arith.constant dense<0.000000e+00> : vector<1xf32>
    %75 = vector.multi_reduction <add>, %74, %cst_14 [1] : vector<1x256xf32> to vector<1xf32>
    %76 = vector.shape_cast %75 : vector<1xf32> to vector<1x1xf32>
    %cst_15 = arith.constant 0xFF800000 : f32
    %77 = vector.broadcast %cst_15 : f32 to vector<1x256xf32>
    %78 = arith.select %60, %69, %77 : vector<1x256xi1>, vector<1x256xf32>
    %cst_16 = arith.constant dense<0xFF800000> : vector<1xf32>
    %79 = vector.multi_reduction <maximumf>, %78, %cst_16 [1] : vector<1x256xf32> to vector<1xf32>
    %80 = vector.shape_cast %79 : vector<1xf32> to vector<1x1xf32>
    %cst_17 = arith.constant 9.99999996E-13 : f32
    %81 = vector.broadcast %cst_17 : f32 to vector<1x1xf32>
    %82 = arith.maximumf %76, %81 : vector<1x1xf32>
    %cst_18 = arith.constant 1.000000e+00 : f32
    %83 = vector.broadcast %cst_18 : f32 to vector<1x1xf32>
    %84 = arith.divf %83, %82 : vector<1x1xf32>
    %85 = vector.broadcast %80 : vector<1x1xf32> to vector<1x256xf32>
    %86 = arith.subf %69, %85 : vector<1x256xf32>
    %87 = vector.broadcast %84 : vector<1x1xf32> to vector<1x256xf32>
    %88 = arith.mulf %86, %87 : vector<1x256xf32>
    %89 = math.exp %88 : vector<1x256xf32>
    %cst_19 = arith.constant 0.000000e+00 : f32
    %90 = vector.broadcast %cst_19 : f32 to vector<1x256xf32>
    %91 = arith.select %60, %89, %90 : vector<1x256xi1>, vector<1x256xf32>
    %92 = arith.sitofp %58 : vector<1x256xi32> to vector<1x256xf32>
    %93 = tpu.iota {dimensions = array<i32: 0>} : vector<2x256xi32>
    %c0_i32 = arith.constant 0 : i32
    %94 = vector.broadcast %c0_i32 : i32 to vector<2x256xi32>
    %95 = arith.cmpi eq, %93, %94 : vector<2x256xi32>
    %cst_20 = arith.constant 1.000000e+00 : f32
    %96 = vector.broadcast %cst_20 : f32 to vector<2x256xf32>
    %97 = vector.shape_cast %92 : vector<1x256xf32> to vector<1x256xf32>
    %98 = vector.broadcast %97 : vector<1x256xf32> to vector<2x256xf32>
    %99 = arith.select %95, %96, %98 : vector<2x256xi1>, vector<2x256xf32>
    %100 = vector.broadcast %91 : vector<1x256xf32> to vector<2x256xf32>
    %101 = arith.mulf %100, %99 : vector<2x256xf32>
    %cst_21 = arith.constant dense<0.000000e+00> : vector<2xf32>
    %102 = vector.multi_reduction <add>, %101, %cst_21 [1] : vector<2x256xf32> to vector<2xf32>
    %103 = vector.shape_cast %102 : vector<2xf32> to vector<2x1xf32>
    %104 = vector.extract_strided_slice %103 {offsets = [0, 0], sizes = [1, 1], strides = [1, 1]} : vector<2x1xf32> to vector<1x1xf32>
    %cst_22 = arith.constant 1.000000e+00 : f32
    %105 = vector.broadcast %cst_22 : f32 to vector<1x1xf32>
    %106 = arith.divf %105, %104 : vector<1x1xf32>
    %107 = vector.extract_strided_slice %103 {offsets = [1, 0], sizes = [1, 1], strides = [1, 1]} : vector<2x1xf32> to vector<1x1xf32>
    %108 = arith.mulf %107, %106 : vector<1x1xf32>
    %109 = vector.broadcast %108 : vector<1x1xf32> to vector<1x256xf32>
    %110 = arith.subf %92, %109 : vector<1x256xf32>
    %cst_23 = arith.constant 0.000000e+00 : f32
    %111 = vector.broadcast %cst_23 : f32 to vector<1x256xf32>
    %112 = arith.select %60, %110, %111 : vector<1x256xi1>, vector<1x256xf32>
    %113 = arith.mulf %112, %112 : vector<1x256xf32>
    %114 = tpu.iota {dimensions = array<i32: 0>} : vector<3x256xi32>
    %c0_i32_24 = arith.constant 0 : i32
    %115 = vector.broadcast %c0_i32_24 : i32 to vector<3x256xi32>
    %116 = arith.cmpi eq, %114, %115 : vector<3x256xi32>
    %c1_i32 = arith.constant 1 : i32
    %117 = vector.broadcast %c1_i32 : i32 to vector<3x256xi32>
    %118 = arith.cmpi eq, %114, %117 : vector<3x256xi32>
    %119 = vector.shape_cast %112 : vector<1x256xf32> to vector<1x256xf32>
    %120 = vector.broadcast %119 : vector<1x256xf32> to vector<3x256xf32>
    %121 = vector.shape_cast %113 : vector<1x256xf32> to vector<1x256xf32>
    %122 = vector.broadcast %121 : vector<1x256xf32> to vector<3x256xf32>
    %123 = arith.select %118, %120, %122 : vector<3x256xi1>, vector<3x256xf32>
    %124 = vector.shape_cast %91 : vector<1x256xf32> to vector<1x256xf32>
    %125 = vector.broadcast %124 : vector<1x256xf32> to vector<3x256xf32>
    %126 = arith.select %116, %125, %123 : vector<3x256xi1>, vector<3x256xf32>
    %127 = vector.broadcast %113 : vector<1x256xf32> to vector<3x256xf32>
    %128 = arith.mulf %127, %126 : vector<3x256xf32>
    %cst_25 = arith.constant dense<0.000000e+00> : vector<3xf32>
    %129 = vector.multi_reduction <add>, %128, %cst_25 [1] : vector<3x256xf32> to vector<3xf32>
    %130 = vector.shape_cast %129 : vector<3xf32> to vector<3x1xf32>
    %131 = vector.extract_strided_slice %130 {offsets = [0, 0], sizes = [1, 1], strides = [1, 1]} : vector<3x1xf32> to vector<1x1xf32>
    %132 = arith.mulf %131, %106 : vector<1x1xf32>
    %133 = vector.extract_strided_slice %130 {offsets = [1, 0], sizes = [1, 1], strides = [1, 1]} : vector<3x1xf32> to vector<1x1xf32>
    %cst_26 = arith.constant 7.812500e-03 : f32
    %134 = vector.broadcast %cst_26 : f32 to vector<1x1xf32>
    %135 = arith.mulf %133, %134 : vector<1x1xf32>
    %136 = vector.extract_strided_slice %130 {offsets = [2, 0], sizes = [1, 1], strides = [1, 1]} : vector<3x1xf32> to vector<1x1xf32>
    %cst_27 = arith.constant 7.812500e-03 : f32
    %137 = vector.broadcast %cst_27 : f32 to vector<1x1xf32>
    %138 = arith.mulf %136, %137 : vector<1x1xf32>
    %139 = math.rsqrt %132 : vector<1x1xf32>
    %140 = arith.mulf %139, %139 : vector<1x1xf32>
    %141 = arith.mulf %135, %139 : vector<1x1xf32>
    %142 = arith.mulf %141, %140 : vector<1x1xf32>
    %143 = arith.mulf %138, %140 : vector<1x1xf32>
    %144 = arith.mulf %143, %140 : vector<1x1xf32>
    %cst_28 = arith.constant 3.000000e+00 : f32
    %145 = vector.broadcast %cst_28 : f32 to vector<1x1xf32>
    %146 = arith.subf %144, %145 : vector<1x1xf32>
    %147 = tpu.iota {dimensions = array<i32: 1>} : vector<1x128xi32>
    %c0_i32_29 = arith.constant 0 : i32
    %148 = vector.broadcast %c0_i32_29 : i32 to vector<1x128xi32>
    %149 = arith.cmpi eq, %147, %148 : vector<1x128xi32>
    %c1_i32_30 = arith.constant 1 : i32
    %150 = vector.broadcast %c1_i32_30 : i32 to vector<1x128xi32>
    %151 = arith.cmpi eq, %147, %150 : vector<1x128xi32>
    %cst_31 = arith.constant 0.000000e+00 : f32
    %152 = vector.shape_cast %146 : vector<1x1xf32> to vector<1x1xf32>
    %153 = vector.broadcast %152 : vector<1x1xf32> to vector<1x128xf32>
    %154 = vector.broadcast %cst_31 : f32 to vector<1x128xf32>
    %155 = arith.select %151, %153, %154 : vector<1x128xi1>, vector<1x128xf32>
    %156 = vector.shape_cast %142 : vector<1x1xf32> to vector<1x1xf32>
    %157 = vector.broadcast %156 : vector<1x1xf32> to vector<1x128xf32>
    %158 = arith.select %149, %157, %155 : vector<1x128xi1>, vector<1x128xf32>
    %c0_32 = arith.constant 0 : index
    %c0_33 = arith.constant 0 : index
    %c0_34 = arith.constant 0 : index
    %159 = vector.load %arg6[%c0_32, %c0_33, %c0_34] : memref<1x1x128xf32, #tpu.memory_space<vmem>>, vector<1x1x128xf32>
    %160 = vector.shape_cast %159 : vector<1x1x128xf32> to vector<1x128xf32>
    %161 = vector.shape_cast %158 : vector<1x128xf32> to vector<1x1x128xf32>
    tpu.vector_store %arg6[%c0_32, %c0_33, %c0_34], %161 {strides = array<i32>} : memref<1x1x128xf32, #tpu.memory_space<vmem>>, vector<1x1x128xf32>,
    return
  }
  func.func @transform_0(%arg0: i32, %arg1: memref<1xi32, #tpu.memory_space<smem>>) -> (i32, i32, i32) {
    %c0_i32 = arith.constant 0 : i32
    %c0_i32_0 = arith.constant 0 : i32
    %c0_i32_1 = arith.constant 0 : i32
    %c0_i32_2 = arith.constant 0 : i32
    return %c0_i32, %c0_i32_0, %c0_i32_1 : i32, i32, i32
  }
  func.func @transform_1(%arg0: i32, %arg1: memref<1xi32, #tpu.memory_space<smem>>) -> (i32, i32, i32) {
    %0 = arith.index_cast %arg0 : i32 to index
    %1 = memref.load %arg1[%0] : memref<1xi32, #tpu.memory_space<smem>>
    %c0_i32 = arith.constant 0 : i32
    %c0_i32_0 = arith.constant 0 : i32
    %c0_i32_1 = arith.constant 0 : i32
    return %1, %c0_i32, %c0_i32_0 : i32, i32, i32
  }
  func.func @transform_2(%arg0: i32, %arg1: memref<1xi32, #tpu.memory_space<smem>>) -> i32 {
    %c0_i32 = arith.constant 0 : i32
    %c0_i32_0 = arith.constant 0 : i32
    return %c0_i32 : i32
  }
  func.func @transform_3(%arg0: i32, %arg1: memref<1xi32, #tpu.memory_space<smem>>) -> (i32, i32, i32) {
    %c0_i32 = arith.constant 0 : i32
    %c0_i32_0 = arith.constant 0 : i32
    %c0_i32_1 = arith.constant 0 : i32
    return %arg0, %c0_i32, %c0_i32_0 : i32, i32, i32
  }
  func.func @transform_4(%arg0: i32, %arg1: memref<1xi32, #tpu.memory_space<smem>>) -> (i32, i32, i32) {
    %c0_i32 = arith.constant 0 : i32
    %c0_i32_0 = arith.constant 0 : i32
    %c0_i32_1 = arith.constant 0 : i32
    return %arg0, %c0_i32, %c0_i32_0 : i32, i32, i32
  }
}

</mosaic_0001>

<llo_original>
// kernel: anchor_dp_forward.1
$region0: #{anchor_dp_forward.1}
  #allocation0 [shape = 'u32[]', space=smem, size = 0x4, offset = 0x4, fixed_abs, tag = 'smem constant byte address 0x4 - core index']
  #allocation1 [shape = 'u32[144,128]{1,0:T(1,128)}', space=vmem, size = 0x12000, scoped, tag = 'internal scratch']
  #allocation2 [shape = 's32[1]{0}', space=sflag, size = 0x4, scoped, tag = 'scoped memory for anchor_dp_forward.1']
  #allocation3 [shape = 's32[1]{0:T(128)S(6)}', space=smem, size = 0x200, scoped, tag = 'prefetched SMEM operand 0']
  %s0 = inlined_call_operand.<no memory space> [shape: s32[1], index: 0, kind: input, shape index: {}]
  %s1 = inlined_call_operand.vmem [shape: f32[1,4,256], index: 1, kind: input, shape index: {}]
  %s2 = inlined_call_operand.vmem [shape: f32[4,4,8], index: 2, kind: input, shape index: {}]
  %s3 = inlined_call_operand.vmem [shape: f32[4], index: 3, kind: input, shape index: {}]
  %s4 = inlined_call_operand.hbm [shape: f32[1,1,128], index: 4, kind: output, shape index: {0}]
  %s5 = inlined_call_operand.vmem [shape: f32[1,1,128], index: 5, kind: output, shape index: {1}]
  %6 = xla_tuple %s4, %s5
  %s7 = sld [smem:[#allocation0]]
  $region34: #{anchor_dp_forward.1} parent=0
    _
  %s9 = ssub.s32 1, %s7
  %s10 = scalar_select 0, %s9, %s7
  %11 = sst [smem:[#allocation3]] %s0
  $region1: #{anchor_dp_forward.1} parent=0
    #allocation4 [shape = 'u8[512]{0}', space=smem, size = 0x200, scoped, tag = 'input window, operand 3, single buffered']
    #allocation5 [shape = 's32[1]{0}', space=sflag, size = 0x4, scoped, tag = 'scoped memory for anchor_dp_forward.1']
    #allocation6 [shape = 's32[1]{0}', space=sflag, size = 0x4, scoped, tag = 'scoped memory for anchor_dp_forward.1']
    #allocation7 [shape = 'u8[512]{0}', space=vmem, size = 0x400, scoped, tag = 'output window, operand 0, single buffered']
    %12 = vsyncpa [#allocation6], 0
    %13 = vsyncpa [#allocation5], 0
    // Predicated region
    $region2: #{anchor_dp_forward.1} parent=1 // pred_check
      _
    $region3: #{anchor_dp_forward.1} parent=1 // pred_check_branch
      %15 = sbr.rel (0) target = $region5
    $region4: #{anchor_dp_forward.1} parent=1 // pred_region
      _
    $region5: #{anchor_dp_forward.1} parent=1 // pred_fallthru
      _
    // Predicated region
    $region6: #{anchor_dp_forward.1} parent=1 // pred_check
      _
    $region7: #{anchor_dp_forward.1} parent=1 // pred_check_branch
      %17 = sbr.rel (0) target = $region9
    $region8: #{anchor_dp_forward.1} parent=1 // pred_region
      %s18 = sld [smem:[#allocation3]]
      %p19 = scmp.lt.s32.totalorder %s18, 3
      %s20 = scalar_select %p19, %s18, 3
      %s21 = smul.addr %s20, 4
      %s22 = scalar_lea.vmem %s2, %s21
      %s23 = sld [smem:[#allocation3]]
    $region9: #{anchor_dp_forward.1} parent=1 // pred_fallthru
      _
    // Predicated region
    $region10: #{anchor_dp_forward.1} parent=1 // pred_check
      _
    $region11: #{anchor_dp_forward.1} parent=1 // pred_check_branch
      %25 = sbr.rel (0) target = $region13
    $region12: #{anchor_dp_forward.1} parent=1 // pred_region
      %s27 = ssub.s32 16, 16
      %28 = vsyncadd [#allocation6], %s27
      %s30 = sshll.u32 %s3, 4
      %s31 = int_to_ptr.vmem [resolvable:$true] %s30
      %33 = dma.vmem_to_smem %s31, 16, [#allocation4], [#allocation6]
    $region13: #{anchor_dp_forward.1} parent=1 // pred_fallthru
      _
    // Predicated region
    $region14: #{anchor_dp_forward.1} parent=1 // pred_check
      _
    $region15: #{anchor_dp_forward.1} parent=1 // pred_check_branch
      %35 = sbr.rel (0) target = $region17
    $region16: #{anchor_dp_forward.1} parent=1 // pred_region
      %36 = dma.done [#allocation6], 16
    $region17: #{anchor_dp_forward.1} parent=1 // pred_fallthru
      _
    %37 = sfence
    %s38 = sld [smem:[#allocation3]]
    %p39 = scmp.lt.s32.totalorder %s38, 3
    %s40 = scalar_select %p39, %s38, 3
    %s41 = smul.addr %s40, 4
    %s42 = scalar_lea.vmem %s2, %s41
    %s43 = sld [smem:[#allocation3]]
    %p44 = scmp.lt.s32.totalorder %s43, 3
    %s45 = scalar_select %p44, %s43, 3
    %s46 = smul.addr %s45, 4
    %s47 = scalar_lea.vmem %s2, %s46
    %s48 = sld [smem:[#allocation3]]
    %v49 = vld [vmem:[%s47] sm:$0xf]
    %v50 = vmul.f32 %v49, %v49
    %vm51 = vcmask 60416
    %v52 = vsel %vm51, %v50, 0.0
    %v53 = vrot.slane %v52, 4
    %v54 = vadd.f32 %v52, %v53
    %v55 = vrot.slane %v54, 2
    %v56 = vadd.f32 %v54, %v55
    %v57 = vrot.slane %v56, 1
    %v58 = vadd.f32 %v56, %v57
    %v59 = vmax.f32 %v58, 1e-24
    %v60 = vrsqrt.pop %v59
    %v61 = vmul.f32 %v60, %v49
    %v62 = vld [vmem:[%s1] sm:$0xff]
    %64 = vset.pattern.permute.xlu0 0
    %65 = vperm.xlu0 %64, %v61
    %v66 = vpop.permute.xlu0 %65
    %v68 = vunpack.c.l.s4 839922192
    %v69 = vunpack.c.0.s8 %v68
    %v70 = vlaneseq
    %v71 = vshrl.u32 %v70, 7
    %v72 = vsub.s32 %v69, %v71
    %v73 = vrot.slane %v66, %v72
    %v75 = vmul.f32 %v62, %v73
    %v77 = vcombine.high %v62, %v62
    %79 = vrot.lane.b32.xlu0 %v62, 124
    %v80 = vpop.permute.xlu0 %79
    %81 = vrot.lane.b32.xlu0 %v77, 124
    %v82 = vpop.permute.xlu0 %81
    %v83 = vlaneseq
    %v84 = vand.u32 %v83, 127
    %vm85 = vcmp.lt.s32.totalorder %v84, 124
    %v86 = vsel %vm85, %v80, %v82
    %v87 = vsel %vm85, %v82, %v80
    %88 = vset.pattern.permute.xlu0 4
    %89 = vperm.xlu0 %88, %v61
    %v90 = vpop.permute.xlu0 %89
    %v92 = vmul.f32 %v86, %v90
    %v93 = vmul.f32 %v87, %v90
    %v96 = vcombine.low %v92, %v93
    %v98 = vadd.f32 %v75, %v96
    %99 = vrot.lane.b32.xlu0 %v62, 127
    %v100 = vpop.permute.xlu0 %99
    %101 = vrot.lane.b32.xlu0 %v77, 127
    %v102 = vpop.permute.xlu0 %101
    %vm103 = vcmp.lt.s32.totalorder %v84, 127
    %v104 = vsel %vm103, %v100, %v102
    %v105 = vsel %vm103, %v102, %v100
    %106 = vset.pattern.permute.xlu0 1
    %107 = vperm.xlu0 %106, %v61
    %v108 = vpop.permute.xlu0 %107
    %v110 = vmul.f32 %v104, %v108
    %v111 = vmul.f32 %v105, %v108
    %112 = vrot.lane.b32.xlu0 %v62, 123
    %v113 = vpop.permute.xlu0 %112
    %114 = vrot.lane.b32.xlu0 %v77, 123
    %v115 = vpop.permute.xlu0 %114
    %vm116 = vcmp.lt.s32.totalorder %v84, 123
    %v117 = vsel %vm116, %v113, %v115
    %v118 = vsel %vm116, %v115, %v113
    %119 = vset.pattern.permute.xlu0 5
    %120 = vperm.xlu0 %119, %v61
    %v121 = vpop.permute.xlu0 %120
    %v123 = vmul.f32 %v117, %v121
    %v124 = vmul.f32 %v118, %v121
    %v125 = vadd.f32 %v110, %v123
    %v126 = vadd.f32 %v111, %v124
    %127 = vrot.lane.b32.xlu0 %v62, 126
    %v128 = vpop.permute.xlu0 %127
    %129 = vrot.lane.b32.xlu0 %v77, 126
    %v130 = vpop.permute.xlu0 %129
    %vm131 = vcmp.lt.s32.totalorder %v84, 126
    %v132 = vsel %vm131, %v128, %v130
    %v133 = vsel %vm131, %v130, %v128
    %134 = vset.pattern.permute.xlu0 2
    %135 = vperm.xlu0 %134, %v61
    %v136 = vpop.permute.xlu0 %135
    %v138 = vmul.f32 %v132, %v136
    %v139 = vmul.f32 %v133, %v136
    %140 = vrot.lane.b32.xlu0 %v62, 122
    %v141 = vpop.permute.xlu0 %140
    %142 = vrot.lane.b32.xlu0 %v77, 122
    %v143 = vpop.permute.xlu0 %142
    %vm144 = vcmp.lt.s32.totalorder %v84, 122
    %v145 = vsel %vm144, %v141, %v143
    %v146 = vsel %vm144, %v143, %v141
    %147 = vset.pattern.permute.xlu0 6
    %148 = vperm.xlu0 %147, %v61
    %v149 = vpop.permute.xlu0 %148
    %v151 = vmul.f32 %v145, %v149
    %v152 = vmul.f32 %v146, %v149
    %v153 = vadd.f32 %v138, %v151
    %v154 = vadd.f32 %v139, %v152
    %155 = vrot.lane.b32.xlu0 %v62, 125
    %v156 = vpop.permute.xlu0 %155
    %157 = vrot.lane.b32.xlu0 %v77, 125
    %v158 = vpop.permute.xlu0 %157
    %vm159 = vcmp.lt.s32.totalorder %v84, 125
    %v160 = vsel %vm159, %v156, %v158
    %v161 = vsel %vm159, %v158, %v156
    %162 = vset.pattern.permute.xlu0 3
    %163 = vperm.xlu0 %162, %v61
    %v164 = vpop.permute.xlu0 %163
    %v166 = vmul.f32 %v160, %v164
    %v167 = vmul.f32 %v161, %v164
    %168 = vrot.lane.b32.xlu0 %v62, 121
    %v169 = vpop.permute.xlu0 %168
    %170 = vrot.lane.b32.xlu0 %v77, 121
    %v171 = vpop.permute.xlu0 %170
    %vm172 = vcmp.lt.s32.totalorder %v84, 121
    %v173 = vsel %vm172, %v169, %v171
    %v174 = vsel %vm172, %v171, %v169
    %175 = vset.pattern.permute.xlu0 7
    %176 = vperm.xlu0 %175, %v61
    %v177 = vpop.permute.xlu0 %176
    %v179 = vmul.f32 %v173, %v177
    %v180 = vmul.f32 %v174, %v177
    %v181 = vadd.f32 %v166, %v179
    %v182 = vadd.f32 %v167, %v180
    %v185 = vcombine.low %v125, %v126
    %v187 = vadd.f32 %v98, %v185
    %v188 = vadd.f32 %v153, %v181
    %v189 = vadd.f32 %v154, %v182
    %v192 = vcombine.low %v188, %v189
    %v194 = vadd.f32 %v187, %v192
    %v196 = vcombine.high %v194, %v194
    %vm198 = vcmask 1043456
    %v199 = vsel %vm198, %v194, 0.0
    %v200 = vrot.slane %v199, 4
    %v201 = vadd.f32 %v199, %v200
    %v202 = vrot.slane %v201, 2
    %v203 = vadd.f32 %v201, %v202
    %v204 = vrot.slane %v203, 1
    %v205 = vadd.f32 %v203, %v204
    %v206 = vsel %vm198, %v196, 0.0
    %v207 = vrot.slane %v206, 4
    %v208 = vadd.f32 %v206, %v207
    %v209 = vrot.slane %v208, 2
    %v210 = vadd.f32 %v208, %v209
    %v211 = vrot.slane %v210, 1
    %v212 = vadd.f32 %v210, %v211
    %s213 = sld [smem:[#allocation3]]
    %s214 = sld [smem:[#allocation4 + %s213]]
    %v215 = vadd.s32 %v84, 128
    %vm216 = vcmp.lt.s32.totalorder %v84, 128
    %vm217 = vcmp.lt.s32.totalorder %v215, 128
    %v218 = vstv %s214
    %v219 = vadd.f32 %v205, %v218
    %v220 = vadd.f32 %v212, %v218
    %vm221 = vcmp.ge.f32.partialorder %v219, 0.0
    %vm222 = vcmp.ge.f32.partialorder %v220, 0.0
    %v223 = vmul.f32 %v219, 0.001
    %v224 = vmul.f32 %v220, 0.001
    %v225 = vsel %vm221, %v219, %v223
    %v226 = vsel %vm222, %v220, %v224
    %v227 = vsel %vm216, %v225, 0.0
    %v228 = vsel %vm217, %v226, 0.0
    %229 = vst [vmem:[#allocation7] sm:$0x1] %v227
    %v230 = vand.u32 2147483647, %v227
    %v231 = vand.u32 2147483647, %v228
    %v232 = vadd.f32 %v230, %v231
    %233 = vadd.xlane.f32.xlu0 %v232
    %v234 = vpop.xlane.xlu0 %233
    %v235 = vsel %vm216, %v225, -inf
    %v236 = vsel %vm217, %v226, -inf
    %v237 = vmax.f32 %v235, %v236
    %238 = vmax.xlane.f32.xlu0 %v237
    %v239 = vpop.xlane.xlu0 %238
    %v240 = vmax.f32 %v234, 1e-12
    %v241 = vrcp.pop %v240
    %v242 = vmul.f32 1.0, %v241
    %v243 = vsub.f32 %v227, %v239
    %v244 = vsub.f32 %v228, %v239
    %v245 = vmul.f32 %v243, %v242
    %v246 = vmul.f32 %v244, %v242
    %v247 = vmul.f32 %v245, 1.442695
    %v248 = vpow.pop %v247
    %v249 = vmul.f32 %v246, 1.442695
    %v250 = vpow.pop %v249
    %v251 = vsel %vm216, %v248, 0.0
    %v252 = vsel %vm217, %v250, 0.0
    %v253 = vcvt.s32.f32 %v84
    %v254 = vcvt.s32.f32 %v215
    %v255 = vlaneseq
    %v256 = vshrl.u32 %v255, 7
    %vm257 = vcmp.eq.s32.totalorder %v256, 0
    %v258 = vsel %vm257, 1.0, %v253
    %v259 = vsel %vm257, 1.0, %v254
    %v260 = vmul.f32 %v251, %v258
    %v261 = vmul.f32 %v252, %v259
    %vm262 = vcmask 1041408
    %v263 = vsel %vm262, %v260, 0.0
    %v264 = vsel %vm262, %v261, 0.0
    %v265 = vadd.f32 %v263, %v264
    %266 = vadd.xlane.f32.xlu0 %v265
    %v267 = vpop.xlane.xlu0 %266
    %v268 = vrcp.pop %v267
    %v269 = vmul.f32 1.0, %v268
    %v271 = vrot.slane %v269, 7
    %v273 = vmul.f32 %v267, %v271
    %275 = vset.pattern.permute.xlu0 0
    %276 = vperm.xlu0 %275, %v273
    %v277 = vpop.permute.xlu0 %276
    %v279 = vsub.f32 %v253, %v277
    %v280 = vsub.f32 %v254, %v277
    %v281 = vsel %vm216, %v279, 0.0
    %v282 = vsel %vm217, %v280, 0.0
    %v283 = vmul.f32 %v281, %v281
    %v284 = vmul.f32 %v282, %v282
    %vm285 = vcmp.eq.s32.totalorder %v256, 1
    %v286 = vlaneseq
    %v287 = vshrl.u32 %v286, 7
    %v288 = vsub.s32 1, %v287
    %v289 = vrot.slane %v281, %v288
    %v290 = vlaneseq
    %v291 = vshrl.u32 %v290, 7
    %v292 = vsub.s32 1, %v291
    %v293 = vrot.slane %v282, %v292
    %v294 = vlaneseq
    %v295 = vshrl.u32 %v294, 7
    %v296 = vsub.s32 1, %v295
    %v297 = vrot.slane %v283, %v296
    %v298 = vlaneseq
    %v299 = vshrl.u32 %v298, 7
    %v300 = vsub.s32 1, %v299
    %v301 = vrot.slane %v284, %v300
    %v302 = vsel %vm285, %v289, %v297
    %v303 = vsel %vm285, %v293, %v301
    %v304 = vsel %vm257, %v251, %v302
    %v305 = vsel %vm257, %v252, %v303
    %v306 = vmul.f32 %v297, %v304
    %v307 = vmul.f32 %v301, %v305
    %vm308 = vcmask 1042432
    %v309 = vsel %vm308, %v306, 0.0
    %v310 = vsel %vm308, %v307, 0.0
    %v311 = vadd.f32 %v309, %v310
    %312 = vadd.xlane.f32.xlu0 %v311
    %v313 = vpop.xlane.xlu0 %312
    %v314 = vmul.f32 %v313, %v269
    %v315 = vmul.f32 %v313, 0.0078125
    %v316 = vrsqrt.pop %v314
    %v317 = vmul.f32 %v316, %v316
    %v319 = vrot.slane %v316, 7
    %v321 = vmul.f32 %v315, %v319
    %v323 = vrot.slane %v317, 7
    %v325 = vmul.f32 %v321, %v323
    %v326 = vrot.slane %v317, 6
    %v328 = vmul.f32 %v315, %v326
    %v329 = vmul.f32 %v328, %v326
    %v330 = vsub.f32 %v329, 3.0
    %vm331 = vcmp.eq.s32.totalorder %v84, 0
    %vm332 = vcmp.eq.s32.totalorder %v84, 1
    %334 = vset.pattern.permute.xlu0 0
    %335 = vperm.xlu0 %334, %v330
    %v336 = vpop.permute.xlu0 %335
    %v338 = vsel %vm332, %v336, 0.0
    %340 = vset.pattern.permute.xlu0 0
    %341 = vperm.xlu0 %340, %v325
    %v342 = vpop.permute.xlu0 %341
    %v345 = vrot.slane %v338, 1
    %v347 = vsel %vm331, %v342, %v345
    %348 = vst [vmem:[%s5 - $0x1] sm:$0x2] %v347
    // Predicated region
    $region18: #{anchor_dp_forward.1} parent=1 // pred_check
      _
    $region19: #{anchor_dp_forward.1} parent=1 // pred_check_branch
      %350 = sbr.rel (0) target = $region21
    $region20: #{anchor_dp_forward.1} parent=1 // pred_region
      %s352 = ssub.s32 16, 16
      %353 = vsyncadd [#allocation5], %s352
      %s355 = sshll.u32 [#allocation7], 4
      %s356 = int_to_ptr.vmem [resolvable:$true] %s355
      %358 = dma.vmem_to_hbm [thread:$0]  %s356, 16, %s4, [#allocation5]
    $region21: #{anchor_dp_forward.1} parent=1 // pred_fallthru
      _
    // Predicated region
    $region22: #{anchor_dp_forward.1} parent=1 // pred_check
      _
    $region23: #{anchor_dp_forward.1} parent=1 // pred_check_branch
      %360 = sbr.rel (0) target = $region25
    $region24: #{anchor_dp_forward.1} parent=1 // pred_region
      _
    $region25: #{anchor_dp_forward.1} parent=1 // pred_fallthru
      _
    // Predicated region
    $region26: #{anchor_dp_forward.1} parent=1 // pred_check
      _
    $region27: #{anchor_dp_forward.1} parent=1 // pred_check_branch
      %362 = sbr.rel (0) target = $region29
    $region28: #{anchor_dp_forward.1} parent=1 // pred_region
      %363 = dma.done [#allocation5], 16
    $region29: #{anchor_dp_forward.1} parent=1 // pred_fallthru
      _
    // Predicated region
    $region30: #{anchor_dp_forward.1} parent=1 // pred_check
      _
    $region31: #{anchor_dp_forward.1} parent=1 // pred_check_branch
      %365 = sbr.rel (0) target = $region33
    $region32: #{anchor_dp_forward.1} parent=1 // pred_region
      _
    $region33: #{anchor_dp_forward.1} parent=1 // pred_fallthru
      _
    %366 = vsyncpa [#allocation5], 1
    %367 = vsyncpa [#allocation6], 1

</llo_original>
